<compile_context>
chip_gen: v7x
topology: tpu7x:2x2x1
jax: 0.10.0
libtpu: 0.0.40
codegen_flags: <defaults>
</compile_context>

<pallas_src>
import functools

import jax
import jax.numpy as jnp
from jax import lax
from jax.experimental import pallas as pl
from jax.experimental.pallas import tpu as pltpu

_LN_EPS = 1e-5
_NEG_BIG = -1e30


def encoder_block_kernel(x_ref, wqkv_ref, wproj_ref, wfc1_ref, wfc2_ref,
                         hmask_ref, bmask_ref, vecs_ref, bfc1_ref, out_ref):
    """Whole block in one invocation.  vecs rows: g1, b1, g2, b2, b_proj, b_fc2."""
    f32 = jnp.float32
    cdt = wqkv_ref.dtype                                    # compute dtype (bf16)

    xb = x_ref[...]                                         # (BN, C) f32
    BN, C = xb.shape
    hmask = hmask_ref[...]                                  # (H*BN, C) 0/1, bf16
    HBN = hmask.shape[0]
    H = HBN // BN

    g1 = vecs_ref[0:1, :]
    be1 = vecs_ref[1:2, :]
    g2 = vecs_ref[2:3, :]
    be2 = vecs_ref[3:4, :]
    b_proj = vecs_ref[4:5, :]
    b_fc2 = vecs_ref[5:6, :]

    def layernorm(z, g, b):
        mu = jnp.mean(z, axis=-1, keepdims=True)
        zc = z - mu
        var = jnp.mean(zc * zc, axis=-1, keepdims=True)
        return zc * lax.rsqrt(var + _LN_EPS) * g + b

    # ---- Attention branch -------------------------------------------------
    x1 = layernorm(xb, g1, be1)                             # (BN, C) f32

    # fused QKV projection (qkv_bias=False); softmax scale pre-folded into Q columns
    qkv = jnp.dot(x1.astype(cdt), wqkv_ref[...],
                  preferred_element_type=f32)               # (BN, 3C) f32
    q = qkv[:, :C].astype(cdt)
    k = qkv[:, C:2 * C].astype(cdt)
    v = qkv[:, 2 * C:].astype(cdt)

    # tile keys/values over heads, zero out non-owned channels per head
    kb = jnp.concatenate([k] * H, axis=0) * hmask           # (H*BN, C) bf16
    vb = jnp.concatenate([v] * H, axis=0) * hmask           # (H*BN, C) bf16

    # all heads x all batches scores in one NT matmul
    s = lax.dot_general(q, kb, (((1,), (1,)), ((), ())),
                        preferred_element_type=f32)         # (BN, H*BN)
    s = s + bmask_ref[...]                                  # kill cross-batch entries
    # row max is a per-row constant -> exact softmax stabilizer for every head segment
    s = s - jnp.max(s, axis=-1, keepdims=True)
    e = jnp.exp(s)                                          # (BN, H*BN) f32
    ec = e.astype(cdt)

    ctx_un = jnp.dot(ec, vb, preferred_element_type=f32)    # (BN, C)
    denom = jnp.dot(ec, hmask, preferred_element_type=f32)  # per-head softmax sums
    ctx = ctx_un * pl.reciprocal(denom, approx=True)

    attn_out = jnp.dot(ctx.astype(cdt), wproj_ref[...],
                       preferred_element_type=f32) + b_proj               # (BN, C)
    x2 = xb + attn_out                                      # residual 1 (f32)

    # ---- MLP branch --------------------------------------------------------
    y = layernorm(x2, g2, be2)
    h = jnp.dot(y.astype(cdt), wfc1_ref[...],
                preferred_element_type=f32) + bfc1_ref[...]               # (BN, Hm)
    # TODO(synk): tanh-approx GELU (torch nn.GELU default is exact erf; max diff ~1e-3).
    h = 0.5 * h * (1.0 + jnp.tanh(0.7978845608028654 * (h + 0.044715 * h * h * h)))
    mlp_out = jnp.dot(h.astype(cdt), wfc2_ref[...],
                      preferred_element_type=f32) + b_fc2                 # (BN, C)

    out_ref[...] = (x2 + mlp_out).astype(out_ref.dtype)


@functools.partial(jax.jit, static_argnames=("num_heads", "compute_dtype"))
def transformer_block_forward(x, g1, b1, w_qkv, w_proj, b_proj, g2, b2,
                              w_fc1, b_fc1, w_fc2, b_fc2, *,
                              num_heads, compute_dtype=jnp.bfloat16):
    B, N, C = x.shape
    H = num_heads
    hd = C // H
    BN = B * N
    HBN = H * BN
    Hm = w_fc1.shape[1]
    scale = hd ** (-0.5)
    cdt = compute_dtype

    # fold softmax scale into the Q columns of W_qkv; cast weights to compute dtype
    wqkv_s = jnp.concatenate([w_qkv[:, :C] * scale, w_qkv[:, C:]], axis=1).astype(cdt)
    wproj_c = w_proj.astype(cdt)
    wfc1_c = w_fc1.astype(cdt)
    wfc2_c = w_fc2.astype(cdt)

    # head mask, rows ordered (head, batch, token): hmask[h*BN + r, c] = 1 iff c//hd == h
    hmask = ((jnp.arange(HBN)[:, None] // BN) ==
             (jnp.arange(C)[None, :] // hd)).astype(cdt)                  # (H*BN, C)

    # additive batch mask: query row (b, n) may only attend to key columns of batch b
    q_batch = jnp.arange(BN) // N                                         # (BN,)
    k_batch = (jnp.arange(HBN) % BN) // N                                 # (H*BN,)
    bmask = jnp.where(q_batch[:, None] == k_batch[None, :],
                      0.0, _NEG_BIG).astype(jnp.float32)                  # (BN, H*BN)

    vecs = jnp.stack([g1, b1, g2, b2, b_proj, b_fc2], axis=0).astype(jnp.float32)  # (6, C)
    bfc1 = b_fc1.astype(jnp.float32).reshape(1, Hm)

    x2d = x.reshape(BN, C)                                  # free (contiguous) reshape

    grid_spec = pltpu.PrefetchScalarGridSpec(
        num_scalar_prefetch=0,
        grid=(1,),
        in_specs=[
            pl.BlockSpec((BN, C), lambda i: (0, 0)),        # x (flattened batch)
            pl.BlockSpec((C, 3 * C), lambda i: (0, 0)),     # W_qkv (scaled, bf16)
            pl.BlockSpec((C, C), lambda i: (0, 0)),         # W_proj
            pl.BlockSpec((C, Hm), lambda i: (0, 0)),        # W_fc1
            pl.BlockSpec((Hm, C), lambda i: (0, 0)),        # W_fc2
            pl.BlockSpec((HBN, C), lambda i: (0, 0)),       # head mask
            pl.BlockSpec((BN, HBN), lambda i: (0, 0)),      # additive batch mask
            pl.BlockSpec((6, C), lambda i: (0, 0)),         # packed per-channel vecs
            pl.BlockSpec((1, Hm), lambda i: (0, 0)),        # b_fc1
        ],
        out_specs=pl.BlockSpec((BN, C), lambda i: (0, 0)),
    )

    out2d = pl.pallas_call(
        encoder_block_kernel,
        out_shape=jax.ShapeDtypeStruct((BN, C), x.dtype),
        grid_spec=grid_spec,
        compiler_params=pltpu.CompilerParams(dimension_semantics=("arbitrary",)),
    )(x2d, wqkv_s, wproj_c, wfc1_c, wfc2_c, hmask, bmask, vecs, bfc1)

    return out2d.reshape(B, N, C)


def reference_block(x, g1, b1, w_qkv, w_proj, b_proj, g2, b2,
                    w_fc1, b_fc1, w_fc2, b_fc2, *, num_heads):
    """Plain-JAX (f32, exact-GELU) transcription of the PyTorch forward."""
    B, N, C = x.shape
    hd = C // num_heads
    scale = hd ** (-0.5)

    def ln(z, g, b):
        mu = z.mean(-1, keepdims=True)
        var = ((z - mu) ** 2).mean(-1, keepdims=True)
        return (z - mu) / jnp.sqrt(var + _LN_EPS) * g + b

    x1 = ln(x, g1, b1)
    qkv = (x1 @ w_qkv).reshape(B, N, 3, num_heads, hd)
    qkv = jnp.transpose(qkv, (2, 0, 3, 1, 4))
    q, k, v = qkv[0], qkv[1], qkv[2]
    attn = (q @ jnp.swapaxes(k, -2, -1)) * scale
    attn = jax.nn.softmax(attn, axis=-1)
    a = jnp.transpose(attn @ v, (0, 2, 1, 3)).reshape(B, N, C)
    a = a @ w_proj + b_proj
    x = x + a
    y = ln(x, g2, b2)
    h = y @ w_fc1 + b_fc1
    h = jax.nn.gelu(h, approximate=False)                   # torch nn.GELU default (erf)
    m = h @ w_fc2 + b_fc2
    return x + m


if __name__ == "__main__":
    B, N, C, num_heads = 2, 16, 64, 8
    Hm = 4 * C                                              # mlp_ratio = 4.0

    key = jax.random.PRNGKey(0)
    ks = jax.random.split(key, 12)
    x = jax.random.normal(ks[0], (B, N, C), dtype=jnp.float32)

    g1 = 1.0 + 0.1 * jax.random.normal(ks[1], (C,), dtype=jnp.float32)
    b1 = 0.1 * jax.random.normal(ks[2], (C,), dtype=jnp.float32)
    w_qkv = 0.02 * jax.random.normal(ks[3], (C, 3 * C), dtype=jnp.float32)   # qkv_bias=False
    w_proj = 0.02 * jax.random.normal(ks[4], (C, C), dtype=jnp.float32)
    b_proj = 0.02 * jax.random.normal(ks[5], (C,), dtype=jnp.float32)
    g2 = 1.0 + 0.1 * jax.random.normal(ks[6], (C,), dtype=jnp.float32)
    b2 = 0.1 * jax.random.normal(ks[7], (C,), dtype=jnp.float32)
    w_fc1 = 0.02 * jax.random.normal(ks[8], (C, Hm), dtype=jnp.float32)
    b_fc1 = 0.02 * jax.random.normal(ks[9], (Hm,), dtype=jnp.float32)
    w_fc2 = 0.02 * jax.random.normal(ks[10], (Hm, C), dtype=jnp.float32)
    b_fc2 = 0.02 * jax.random.normal(ks[11], (C,), dtype=jnp.float32)

    out = jax.block_until_ready(
        transformer_block_forward(x, g1, b1, w_qkv, w_proj, b_proj, g2, b2,
                                  w_fc1, b_fc1, w_fc2, b_fc2, num_heads=num_heads))

    ref = reference_block(x, g1, b1, w_qkv, w_proj, b_proj, g2, b2,
                          w_fc1, b_fc1, w_fc2, b_fc2, num_heads=num_heads)

    max_err = float(jnp.max(jnp.abs(out - ref)))
    assert out.shape == ref.shape
    # bf16 matmul inputs + tanh-GELU + approx reciprocal -> relaxed tolerance
    assert jnp.allclose(out, ref, atol=2e-2, rtol=2e-2), f"max_err={max_err}"
    print("KERNEL_OK")
</pallas_src>

<mosaic_0001>
module attributes {stable_mosaic.version = 11 : i64} {
  func.func @encoder_block_kernel(%arg0: i32, %arg1: memref<32x64xf32, #tpu.memory_space<vmem>>, %arg2: memref<64x192xbf16, #tpu.memory_space<vmem>>, %arg3: memref<64x64xbf16, #tpu.memory_space<vmem>>, %arg4: memref<64x256xbf16, #tpu.memory_space<vmem>>, %arg5: memref<256x64xbf16, #tpu.memory_space<vmem>>, %arg6: memref<256x64xbf16, #tpu.memory_space<vmem>>, %arg7: memref<32x256xf32, #tpu.memory_space<vmem>>, %arg8: memref<6x64xf32, #tpu.memory_space<vmem>>, %arg9: memref<1x256xf32, #tpu.memory_space<vmem>>, %arg10: memref<32x64xf32, #tpu.memory_space<vmem>>) attributes {dimension_semantics = [#tpu.dimension_semantics<arbitrary>], iteration_bounds = array<i64: 1>, scalar_prefetch = 0 : i64, scratch_operands = 0 : i64, tpu.core_type = #tpu.core_type<tc>, window_params = [{pipeline_mode = #tpu.pipeline_mode<synchronous>, transform_indices = @transform_0, window_bounds = array<i64: 32, 64>}, {pipeline_mode = #tpu.pipeline_mode<synchronous>, transform_indices = @transform_1, window_bounds = array<i64: 64, 192>}, {pipeline_mode = #tpu.pipeline_mode<synchronous>, transform_indices = @transform_2, window_bounds = array<i64: 64, 64>}, {pipeline_mode = #tpu.pipeline_mode<synchronous>, transform_indices = @transform_3, window_bounds = array<i64: 64, 256>}, {pipeline_mode = #tpu.pipeline_mode<synchronous>, transform_indices = @transform_4, window_bounds = array<i64: 256, 64>}, {pipeline_mode = #tpu.pipeline_mode<synchronous>, transform_indices = @transform_5, window_bounds = array<i64: 256, 64>}, {pipeline_mode = #tpu.pipeline_mode<synchronous>, transform_indices = @transform_6, window_bounds = array<i64: 32, 256>}, {pipeline_mode = #tpu.pipeline_mode<synchronous>, transform_indices = @transform_7, window_bounds = array<i64: 6, 64>}, {pipeline_mode = #tpu.pipeline_mode<synchronous>, transform_indices = @transform_8, window_bounds = array<i64: 1, 256>}, {pipeline_mode = #tpu.pipeline_mode<synchronous>, transform_indices = @transform_9, window_bounds = array<i64: 32, 64>}]} {
    %c0 = arith.constant 0 : index
    %c0_0 = arith.constant 0 : index
    %0 = vector.load %arg1[%c0, %c0_0] : memref<32x64xf32, #tpu.memory_space<vmem>>, vector<32x64xf32>
    %c0_1 = arith.constant 0 : index
    %c0_2 = arith.constant 0 : index
    %1 = vector.load %arg6[%c0_1, %c0_2] : memref<256x64xbf16, #tpu.memory_space<vmem>>, vector<256x64xbf16>
    %c0_3 = arith.constant 0 : index
    %c0_4 = arith.constant 0 : index
    %2 = vector.load %arg8[%c0_3, %c0_4] : memref<6x64xf32, #tpu.memory_space<vmem>>, vector<1x64xf32>
    %c1 = arith.constant 1 : index
    %c0_5 = arith.constant 0 : index
    %3 = vector.load %arg8[%c1, %c0_5] : memref<6x64xf32, #tpu.memory_space<vmem>>, vector<1x64xf32>
    %c2 = arith.constant 2 : index
    %c0_6 = arith.constant 0 : index
    %4 = vector.load %arg8[%c2, %c0_6] : memref<6x64xf32, #tpu.memory_space<vmem>>, vector<1x64xf32>
    %c3 = arith.constant 3 : index
    %c0_7 = arith.constant 0 : index
    %5 = vector.load %arg8[%c3, %c0_7] : memref<6x64xf32, #tpu.memory_space<vmem>>, vector<1x64xf32>
    %c4 = arith.constant 4 : index
    %c0_8 = arith.constant 0 : index
    %6 = vector.load %arg8[%c4, %c0_8] : memref<6x64xf32, #tpu.memory_space<vmem>>, vector<1x64xf32>
    %c5 = arith.constant 5 : index
    %c0_9 = arith.constant 0 : index
    %7 = vector.load %arg8[%c5, %c0_9] : memref<6x64xf32, #tpu.memory_space<vmem>>, vector<1x64xf32>
    %cst = arith.constant dense<0.000000e+00> : vector<32xf32>
    %8 = vector.multi_reduction <add>, %0, %cst [1] : vector<32x64xf32> to vector<32xf32>
    %9 = vector.shape_cast %8 : vector<32xf32> to vector<32x1xf32>
    %cst_10 = arith.constant 6.400000e+01 : f32
    %10 = vector.broadcast %cst_10 : f32 to vector<32x1xf32>
    %11 = arith.divf %9, %10 : vector<32x1xf32>
    %12 = vector.broadcast %11 : vector<32x1xf32> to vector<32x64xf32>
    %13 = arith.subf %0, %12 : vector<32x64xf32>
    %14 = arith.mulf %13, %13 : vector<32x64xf32>
    %cst_11 = arith.constant dense<0.000000e+00> : vector<32xf32>
    %15 = vector.multi_reduction <add>, %14, %cst_11 [1] : vector<32x64xf32> to vector<32xf32>
    %16 = vector.shape_cast %15 : vector<32xf32> to vector<32x1xf32>
    %cst_12 = arith.constant 6.400000e+01 : f32
    %17 = vector.broadcast %cst_12 : f32 to vector<32x1xf32>
    %18 = arith.divf %16, %17 : vector<32x1xf32>
    %cst_13 = arith.constant 9.99999974E-6 : f32
    %19 = vector.broadcast %cst_13 : f32 to vector<32x1xf32>
    %20 = arith.addf %18, %19 : vector<32x1xf32>
    %21 = math.rsqrt %20 : vector<32x1xf32>
    %22 = vector.broadcast %21 : vector<32x1xf32> to vector<32x64xf32>
    %23 = arith.mulf %13, %22 : vector<32x64xf32>
    %24 = vector.broadcast %2 : vector<1x64xf32> to vector<32x64xf32>
    %25 = arith.mulf %23, %24 : vector<32x64xf32>
    %26 = vector.broadcast %3 : vector<1x64xf32> to vector<32x64xf32>
    %27 = arith.addf %25, %26 : vector<32x64xf32>
    %28 = arith.truncf %27 : vector<32x64xf32> to vector<32x64xbf16>
    %c0_14 = arith.constant 0 : index
    %c0_15 = arith.constant 0 : index
    %29 = vector.load %arg2[%c0_14, %c0_15] : memref<64x192xbf16, #tpu.memory_space<vmem>>, vector<64x192xbf16>
    %cst_16 = arith.constant dense<0.000000e+00> : vector<32x192xf32>
    %30 = tpu.matmul %28, %29, %cst_16 {dimension_numbers = #tpu.dot_dimension_numbers<[1], [0], [0], [1], [0, 0, 1, 1], [], []>} : vector<32x64xbf16>, vector<64x192xbf16>, vector<32x192xf32> -> vector<32x192xf32>
    %31 = vector.extract_strided_slice %30 {offsets = [0, 0], sizes = [32, 64], strides = [1, 1]} : vector<32x192xf32> to vector<32x64xf32>
    %32 = arith.truncf %31 : vector<32x64xf32> to vector<32x64xbf16>
    %33 = vector.extract_strided_slice %30 {offsets = [0, 64], sizes = [32, 64], strides = [1, 1]} : vector<32x192xf32> to vector<32x64xf32>
    %34 = arith.truncf %33 : vector<32x64xf32> to vector<32x64xbf16>
    %35 = vector.extract_strided_slice %30 {offsets = [0, 128], sizes = [32, 64], strides = [1, 1]} : vector<32x192xf32> to vector<32x64xf32>
    %36 = arith.truncf %35 : vector<32x64xf32> to vector<32x64xbf16>
    %37 = tpu.concatenate %34, %34, %34, %34, %34, %34, %34, %34 in 0 : vector<32x64xbf16>, vector<32x64xbf16>, vector<32x64xbf16>, vector<32x64xbf16>, vector<32x64xbf16>, vector<32x64xbf16>, vector<32x64xbf16>, vector<32x64xbf16> -> vector<256x64xbf16>
    %38 = arith.mulf %37, %1 : vector<256x64xbf16>
    %39 = tpu.concatenate %36, %36, %36, %36, %36, %36, %36, %36 in 0 : vector<32x64xbf16>, vector<32x64xbf16>, vector<32x64xbf16>, vector<32x64xbf16>, vector<32x64xbf16>, vector<32x64xbf16>, vector<32x64xbf16>, vector<32x64xbf16> -> vector<256x64xbf16>
    %40 = arith.mulf %39, %1 : vector<256x64xbf16>
    %cst_17 = arith.constant dense<0.000000e+00> : vector<32x256xf32>
    %41 = tpu.matmul %32, %38, %cst_17 {dimension_numbers = #tpu.dot_dimension_numbers<[1], [1], [0], [0], [0, 0, 1, 0], [], []>} : vector<32x64xbf16>, vector<256x64xbf16>, vector<32x256xf32> -> vector<32x256xf32>
    %c0_18 = arith.constant 0 : index
    %c0_19 = arith.constant 0 : index
    %42 = vector.load %arg7[%c0_18, %c0_19] : memref<32x256xf32, #tpu.memory_space<vmem>>, vector<32x256xf32>
    %43 = arith.addf %41, %42 : vector<32x256xf32>
    %cst_20 = arith.constant dense<0xFF800000> : vector<32xf32>
    %44 = vector.multi_reduction <maximumf>, %43, %cst_20 [1] : vector<32x256xf32> to vector<32xf32>
    %45 = vector.shape_cast %44 : vector<32xf32> to vector<32x1xf32>
    %46 = vector.broadcast %45 : vector<32x1xf32> to vector<32x256xf32>
    %47 = arith.subf %43, %46 : vector<32x256xf32>
    %48 = math.exp %47 : vector<32x256xf32>
    %49 = arith.truncf %48 : vector<32x256xf32> to vector<32x256xbf16>
    %cst_21 = arith.constant dense<0.000000e+00> : vector<32x64xf32>
    %50 = tpu.matmul %49, %40, %cst_21 {dimension_numbers = #tpu.dot_dimension_numbers<[1], [0], [0], [1], [0, 0, 1, 1], [], []>} : vector<32x256xbf16>, vector<256x64xbf16>, vector<32x64xf32> -> vector<32x64xf32>
    %cst_22 = arith.constant dense<0.000000e+00> : vector<32x64xf32>
    %51 = tpu.matmul %49, %1, %cst_22 {dimension_numbers = #tpu.dot_dimension_numbers<[1], [0], [0], [1], [0, 0, 1, 1], [], []>} : vector<32x256xbf16>, vector<256x64xbf16>, vector<32x64xf32> -> vector<32x64xf32>
    %52 = tpu.reciprocal %51 {approx = true} : vector<32x64xf32> -> vector<32x64xf32>
    %53 = arith.mulf %50, %52 : vector<32x64xf32>
    %54 = arith.truncf %53 : vector<32x64xf32> to vector<32x64xbf16>
    %c0_23 = arith.constant 0 : index
    %c0_24 = arith.constant 0 : index
    %55 = vector.load %arg3[%c0_23, %c0_24] : memref<64x64xbf16, #tpu.memory_space<vmem>>, vector<64x64xbf16>
    %cst_25 = arith.constant dense<0.000000e+00> : vector<32x64xf32>
    %56 = tpu.matmul %54, %55, %cst_25 {dimension_numbers = #tpu.dot_dimension_numbers<[1], [0], [0], [1], [0, 0, 1, 1], [], []>} : vector<32x64xbf16>, vector<64x64xbf16>, vector<32x64xf32> -> vector<32x64xf32>
    %57 = vector.broadcast %6 : vector<1x64xf32> to vector<32x64xf32>
    %58 = arith.addf %56, %57 : vector<32x64xf32>
    %59 = arith.addf %0, %58 : vector<32x64xf32>
    %cst_26 = arith.constant dense<0.000000e+00> : vector<32xf32>
    %60 = vector.multi_reduction <add>, %59, %cst_26 [1] : vector<32x64xf32> to vector<32xf32>
    %61 = vector.shape_cast %60 : vector<32xf32> to vector<32x1xf32>
    %cst_27 = arith.constant 6.400000e+01 : f32
    %62 = vector.broadcast %cst_27 : f32 to vector<32x1xf32>
    %63 = arith.divf %61, %62 : vector<32x1xf32>
    %64 = vector.broadcast %63 : vector<32x1xf32> to vector<32x64xf32>
    %65 = arith.subf %59, %64 : vector<32x64xf32>
    %66 = arith.mulf %65, %65 : vector<32x64xf32>
    %cst_28 = arith.constant dense<0.000000e+00> : vector<32xf32>
    %67 = vector.multi_reduction <add>, %66, %cst_28 [1] : vector<32x64xf32> to vector<32xf32>
    %68 = vector.shape_cast %67 : vector<32xf32> to vector<32x1xf32>
    %cst_29 = arith.constant 6.400000e+01 : f32
    %69 = vector.broadcast %cst_29 : f32 to vector<32x1xf32>
    %70 = arith.divf %68, %69 : vector<32x1xf32>
    %cst_30 = arith.constant 9.99999974E-6 : f32
    %71 = vector.broadcast %cst_30 : f32 to vector<32x1xf32>
    %72 = arith.addf %70, %71 : vector<32x1xf32>
    %73 = math.rsqrt %72 : vector<32x1xf32>
    %74 = vector.broadcast %73 : vector<32x1xf32> to vector<32x64xf32>
    %75 = arith.mulf %65, %74 : vector<32x64xf32>
    %76 = vector.broadcast %4 : vector<1x64xf32> to vector<32x64xf32>
    %77 = arith.mulf %75, %76 : vector<32x64xf32>
    %78 = vector.broadcast %5 : vector<1x64xf32> to vector<32x64xf32>
    %79 = arith.addf %77, %78 : vector<32x64xf32>
    %80 = arith.truncf %79 : vector<32x64xf32> to vector<32x64xbf16>
    %c0_31 = arith.constant 0 : index
    %c0_32 = arith.constant 0 : index
    %81 = vector.load %arg4[%c0_31, %c0_32] : memref<64x256xbf16, #tpu.memory_space<vmem>>, vector<64x256xbf16>
    %cst_33 = arith.constant dense<0.000000e+00> : vector<32x256xf32>
    %82 = tpu.matmul %80, %81, %cst_33 {dimension_numbers = #tpu.dot_dimension_numbers<[1], [0], [0], [1], [0, 0, 1, 1], [], []>} : vector<32x64xbf16>, vector<64x256xbf16>, vector<32x256xf32> -> vector<32x256xf32>
    %c0_34 = arith.constant 0 : index
    %c0_35 = arith.constant 0 : index
    %83 = vector.load %arg9[%c0_34, %c0_35] : memref<1x256xf32, #tpu.memory_space<vmem>>, vector<1x256xf32>
    %84 = vector.broadcast %83 : vector<1x256xf32> to vector<32x256xf32>
    %85 = arith.addf %82, %84 : vector<32x256xf32>
    %cst_36 = arith.constant 5.000000e-01 : f32
    %86 = vector.broadcast %cst_36 : f32 to vector<32x256xf32>
    %87 = arith.mulf %86, %85 : vector<32x256xf32>
    %cst_37 = arith.constant 4.471500e-02 : f32
    %88 = vector.broadcast %cst_37 : f32 to vector<32x256xf32>
    %89 = arith.mulf %88, %85 : vector<32x256xf32>
    %90 = arith.mulf %89, %85 : vector<32x256xf32>
    %91 = arith.mulf %90, %85 : vector<32x256xf32>
    %92 = arith.addf %85, %91 : vector<32x256xf32>
    %cst_38 = arith.constant 0.797884583 : f32
    %93 = vector.broadcast %cst_38 : f32 to vector<32x256xf32>
    %94 = arith.mulf %93, %92 : vector<32x256xf32>
    %95 = math.tanh %94 : vector<32x256xf32>
    %cst_39 = arith.constant 1.000000e+00 : f32
    %96 = vector.broadcast %cst_39 : f32 to vector<32x256xf32>
    %97 = arith.addf %96, %95 : vector<32x256xf32>
    %98 = arith.mulf %87, %97 : vector<32x256xf32>
    %99 = arith.truncf %98 : vector<32x256xf32> to vector<32x256xbf16>
    %c0_40 = arith.constant 0 : index
    %c0_41 = arith.constant 0 : index
    %100 = vector.load %arg5[%c0_40, %c0_41] : memref<256x64xbf16, #tpu.memory_space<vmem>>, vector<256x64xbf16>
    %cst_42 = arith.constant dense<0.000000e+00> : vector<32x64xf32>
    %101 = tpu.matmul %99, %100, %cst_42 {dimension_numbers = #tpu.dot_dimension_numbers<[1], [0], [0], [1], [0, 0, 1, 1], [], []>} : vector<32x256xbf16>, vector<256x64xbf16>, vector<32x64xf32> -> vector<32x64xf32>
    %102 = vector.broadcast %7 : vector<1x64xf32> to vector<32x64xf32>
    %103 = arith.addf %101, %102 : vector<32x64xf32>
    %104 = arith.addf %59, %103 : vector<32x64xf32>
    %c0_43 = arith.constant 0 : index
    %c0_44 = arith.constant 0 : index
    %105 = vector.load %arg10[%c0_43, %c0_44] : memref<32x64xf32, #tpu.memory_space<vmem>>, vector<32x64xf32>
    tpu.vector_store %arg10[%c0_43, %c0_44], %104 {strides = array<i32>} : memref<32x64xf32, #tpu.memory_space<vmem>>, vector<32x64xf32>,
    return
  }
  func.func @transform_0(%arg0: i32) -> (i32, i32) {
    %c0_i32 = arith.constant 0 : i32
    %c0_i32_0 = arith.constant 0 : i32
    %c0_i32_1 = arith.constant 0 : i32
    return %c0_i32, %c0_i32_0 : i32, i32
  }
  func.func @transform_1(%arg0: i32) -> (i32, i32) {
    %c0_i32 = arith.constant 0 : i32
    %c0_i32_0 = arith.constant 0 : i32
    %c0_i32_1 = arith.constant 0 : i32
    return %c0_i32, %c0_i32_0 : i32, i32
  }
  func.func @transform_2(%arg0: i32) -> (i32, i32) {
    %c0_i32 = arith.constant 0 : i32
    %c0_i32_0 = arith.constant 0 : i32
    %c0_i32_1 = arith.constant 0 : i32
    return %c0_i32, %c0_i32_0 : i32, i32
  }
  func.func @transform_3(%arg0: i32) -> (i32, i32) {
    %c0_i32 = arith.constant 0 : i32
    %c0_i32_0 = arith.constant 0 : i32
    %c0_i32_1 = arith.constant 0 : i32
    return %c0_i32, %c0_i32_0 : i32, i32
  }
  func.func @transform_4(%arg0: i32) -> (i32, i32) {
    %c0_i32 = arith.constant 0 : i32
    %c0_i32_0 = arith.constant 0 : i32
    %c0_i32_1 = arith.constant 0 : i32
    return %c0_i32, %c0_i32_0 : i32, i32
  }
  func.func @transform_5(%arg0: i32) -> (i32, i32) {
    %c0_i32 = arith.constant 0 : i32
    %c0_i32_0 = arith.constant 0 : i32
    %c0_i32_1 = arith.constant 0 : i32
    return %c0_i32, %c0_i32_0 : i32, i32
  }
  func.func @transform_6(%arg0: i32) -> (i32, i32) {
    %c0_i32 = arith.constant 0 : i32
    %c0_i32_0 = arith.constant 0 : i32
    %c0_i32_1 = arith.constant 0 : i32
    return %c0_i32, %c0_i32_0 : i32, i32
  }
  func.func @transform_7(%arg0: i32) -> (i32, i32) {
    %c0_i32 = arith.constant 0 : i32
    %c0_i32_0 = arith.constant 0 : i32
    %c0_i32_1 = arith.constant 0 : i32
    return %c0_i32, %c0_i32_0 : i32, i32
  }
  func.func @transform_8(%arg0: i32) -> (i32, i32) {
    %c0_i32 = arith.constant 0 : i32
    %c0_i32_0 = arith.constant 0 : i32
    %c0_i32_1 = arith.constant 0 : i32
    return %c0_i32, %c0_i32_0 : i32, i32
  }
  func.func @transform_9(%arg0: i32) -> (i32, i32) {
    %c0_i32 = arith.constant 0 : i32
    %c0_i32_0 = arith.constant 0 : i32
    %c0_i32_1 = arith.constant 0 : i32
    return %c0_i32, %c0_i32_0 : i32, i32
  }
}

</mosaic_0001>

<llo_original>
// kernel: transformer_block_forward.1
$region0: #{transformer_block_forward.1}
  #allocation0 [shape = 'u32[]', space=smem, size = 0x4, offset = 0x4, fixed_abs, tag = 'smem constant byte address 0x4 - core index']
  #allocation1 [shape = 'u32[144,128]{1,0:T(1,128)}', space=vmem, size = 0x12000, scoped, tag = 'internal scratch']
  %s0 = inlined_call_operand.vmem [shape: f32[32,64], index: 0, kind: input, shape index: {}]
  %s1 = inlined_call_operand.vmem [shape: bf16[64,192], index: 1, kind: input, shape index: {}]
  %s2 = inlined_call_operand.vmem [shape: bf16[64,64], index: 2, kind: input, shape index: {}]
  %s3 = inlined_call_operand.vmem [shape: bf16[64,256], index: 3, kind: input, shape index: {}]
  %s4 = inlined_call_operand.vmem [shape: bf16[256,64], index: 4, kind: input, shape index: {}]
  %s5 = inlined_call_operand.vmem [shape: bf16[256,64], index: 5, kind: input, shape index: {}]
  %s6 = inlined_call_operand.vmem [shape: f32[32,256], index: 6, kind: input, shape index: {}]
  %s7 = inlined_call_operand.vmem [shape: f32[6,64], index: 7, kind: input, shape index: {}]
  %s8 = inlined_call_operand.vmem [shape: f32[1,256], index: 8, kind: input, shape index: {}]
  %s9 = inlined_call_operand.hbm [shape: f32[32,64], index: 9, kind: output, shape index: {}]
  %s10 = sld [smem:[#allocation0]]
  $region46: #{transformer_block_forward.1} parent=0
    _
  %s12 = ssub.s32 1, %s10
  %s13 = scalar_select 0, %s12, %s10
  $region1: #{transformer_block_forward.1} parent=0
    #allocation2 [shape = 'u8[16384]{0}', space=vmem, size = 0x4000, scoped, tag = 'output window, operand 0, single buffered']
    #allocation3 [shape = 's32[1]{0}', space=sflag, size = 0x4, scoped, tag = 'scoped memory for transformer_block_forward.1']
    %14 = vsyncpa [#allocation3], 0
    // Predicated region
    $region2: #{transformer_block_forward.1} parent=1 // pred_check
      _
    $region3: #{transformer_block_forward.1} parent=1 // pred_check_branch
      %16 = sbr.rel (0) target = $region5
    $region4: #{transformer_block_forward.1} parent=1 // pred_region
      _
    $region5: #{transformer_block_forward.1} parent=1 // pred_fallthru
      _
    // Predicated region
    $region6: #{transformer_block_forward.1} parent=1 // pred_check
      _
    $region7: #{transformer_block_forward.1} parent=1 // pred_check_branch
      %18 = sbr.rel (0) target = $region9
    $region8: #{transformer_block_forward.1} parent=1 // pred_region
      _
    $region9: #{transformer_block_forward.1} parent=1 // pred_fallthru
      _
    // Predicated region
    $region10: #{transformer_block_forward.1} parent=1 // pred_check
      _
    $region11: #{transformer_block_forward.1} parent=1 // pred_check_branch
      %20 = sbr.rel (0) target = $region13
    $region12: #{transformer_block_forward.1} parent=1 // pred_region
      _
    $region13: #{transformer_block_forward.1} parent=1 // pred_fallthru
      _
    // Predicated region
    $region14: #{transformer_block_forward.1} parent=1 // pred_check
      _
    $region15: #{transformer_block_forward.1} parent=1 // pred_check_branch
      %22 = sbr.rel (0) target = $region17
    $region16: #{transformer_block_forward.1} parent=1 // pred_region
      _
    $region17: #{transformer_block_forward.1} parent=1 // pred_fallthru
      _
    // Predicated region
    $region18: #{transformer_block_forward.1} parent=1 // pred_check
      _
    $region19: #{transformer_block_forward.1} parent=1 // pred_check_branch
      %24 = sbr.rel (0) target = $region21
    $region20: #{transformer_block_forward.1} parent=1 // pred_region
      _
    $region21: #{transformer_block_forward.1} parent=1 // pred_fallthru
      _
    // Predicated region
    $region22: #{transformer_block_forward.1} parent=1 // pred_check
      _
    $region23: #{transformer_block_forward.1} parent=1 // pred_check_branch
      %26 = sbr.rel (0) target = $region25
    $region24: #{transformer_block_forward.1} parent=1 // pred_region
      _
    $region25: #{transformer_block_forward.1} parent=1 // pred_fallthru
      _
    // Predicated region
    $region26: #{transformer_block_forward.1} parent=1 // pred_check
      _
    $region27: #{transformer_block_forward.1} parent=1 // pred_check_branch
      %28 = sbr.rel (0) target = $region29
    $region28: #{transformer_block_forward.1} parent=1 // pred_region
      _
    $region29: #{transformer_block_forward.1} parent=1 // pred_fallthru
      _
    // Predicated region
    $region30: #{transformer_block_forward.1} parent=1 // pred_check
      _
    $region31: #{transformer_block_forward.1} parent=1 // pred_check_branch
      %30 = sbr.rel (0) target = $region33
    $region32: #{transformer_block_forward.1} parent=1 // pred_region
      _
    $region33: #{transformer_block_forward.1} parent=1 // pred_fallthru
      _
    // Predicated region
    $region34: #{transformer_block_forward.1} parent=1 // pred_check
      _
    $region35: #{transformer_block_forward.1} parent=1 // pred_check_branch
      %32 = sbr.rel (0) target = $region37
    $region36: #{transformer_block_forward.1} parent=1 // pred_region
      _
    $region37: #{transformer_block_forward.1} parent=1 // pred_fallthru
      _
    %v34 = vld [vmem:[%s0] sm:$0xff]
    %v35 = vld [vmem:[%s0 + $0x8] sm:$0xff]
    %v36 = vld [vmem:[%s0 + $0x10] sm:$0xff]
    %v37 = vld [vmem:[%s0 + $0x18] sm:$0xff]
    %v38 = vld [vmem:[%s5] sm:$0xf]
    %v39 = vld [vmem:[%s5 + $0x4] sm:$0xf]
    %v40 = vld [vmem:[%s5 + $0x8] sm:$0xf]
    %v41 = vld [vmem:[%s5 + $0xc] sm:$0xf]
    %v42 = vld [vmem:[%s5 + $0x10] sm:$0xf]
    %v43 = vld [vmem:[%s5 + $0x14] sm:$0xf]
    %v44 = vld [vmem:[%s5 + $0x18] sm:$0xf]
    %v45 = vld [vmem:[%s5 + $0x1c] sm:$0xf]
    %v46 = vld [vmem:[%s5 + $0x20] sm:$0xf]
    %v47 = vld [vmem:[%s5 + $0x24] sm:$0xf]
    %v48 = vld [vmem:[%s5 + $0x28] sm:$0xf]
    %v49 = vld [vmem:[%s5 + $0x2c] sm:$0xf]
    %v50 = vld [vmem:[%s5 + $0x30] sm:$0xf]
    %v51 = vld [vmem:[%s5 + $0x34] sm:$0xf]
    %v52 = vld [vmem:[%s5 + $0x38] sm:$0xf]
    %v53 = vld [vmem:[%s5 + $0x3c] sm:$0xf]
    %v54 = vld [vmem:[%s5 + $0x40] sm:$0xf]
    %v55 = vld [vmem:[%s5 + $0x44] sm:$0xf]
    %v56 = vld [vmem:[%s5 + $0x48] sm:$0xf]
    %v57 = vld [vmem:[%s5 + $0x4c] sm:$0xf]
    %v58 = vld [vmem:[%s5 + $0x50] sm:$0xf]
    %v59 = vld [vmem:[%s5 + $0x54] sm:$0xf]
    %v60 = vld [vmem:[%s5 + $0x58] sm:$0xf]
    %v61 = vld [vmem:[%s5 + $0x5c] sm:$0xf]
    %v62 = vld [vmem:[%s5 + $0x60] sm:$0xf]
    %v63 = vld [vmem:[%s5 + $0x64] sm:$0xf]
    %v64 = vld [vmem:[%s5 + $0x68] sm:$0xf]
    %v65 = vld [vmem:[%s5 + $0x6c] sm:$0xf]
    %v66 = vld [vmem:[%s5 + $0x70] sm:$0xf]
    %v67 = vld [vmem:[%s5 + $0x74] sm:$0xf]
    %v68 = vld [vmem:[%s5 + $0x78] sm:$0xf]
    %v69 = vld [vmem:[%s5 + $0x7c] sm:$0xf]
    %v70 = vld [vmem:[%s7] sm:$0x1]
    %v71 = vld [vmem:[%s7 + $0x1] sm:$0x1]
    %v72 = vld [vmem:[%s7 + $0x2] sm:$0x1]
    %v73 = vld [vmem:[%s7 + $0x3] sm:$0x1]
    %v74 = vld [vmem:[%s7 + $0x4] sm:$0x1]
    %v75 = vld [vmem:[%s7 + $0x5] sm:$0x1]
    %vm76 = vcmask 523264
    %v77 = vsel %vm76, %v34, 0.0
    %78 = vadd.xlane.f32.xlu0 %v77
    %v79 = vpop.xlane.xlu0 %78
    %v80 = vsel %vm76, %v35, 0.0
    %81 = vadd.xlane.f32.xlu0 %v80
    %v82 = vpop.xlane.xlu0 %81
    %v83 = vsel %vm76, %v36, 0.0
    %84 = vadd.xlane.f32.xlu0 %v83
    %v85 = vpop.xlane.xlu0 %84
    %v86 = vsel %vm76, %v37, 0.0
    %87 = vadd.xlane.f32.xlu0 %v86
    %v88 = vpop.xlane.xlu0 %87
    %v89 = vrcp.pop 64.0
    %v90 = vmul.f32 %v79, %v89
    %v91 = vmul.f32 %v82, %v89
    %v92 = vmul.f32 %v85, %v89
    %v93 = vmul.f32 %v88, %v89
    %v94 = vsub.f32 %v34, %v90
    %v95 = vsub.f32 %v35, %v91
    %v96 = vsub.f32 %v36, %v92
    %v97 = vsub.f32 %v37, %v93
    %v98 = vmul.f32 %v94, %v94
    %v99 = vmul.f32 %v95, %v95
    %v100 = vmul.f32 %v96, %v96
    %v101 = vmul.f32 %v97, %v97
    %v102 = vsel %vm76, %v98, 0.0
    %103 = vadd.xlane.f32.xlu0 %v102
    %v104 = vpop.xlane.xlu0 %103
    %v105 = vsel %vm76, %v99, 0.0
    %106 = vadd.xlane.f32.xlu0 %v105
    %v107 = vpop.xlane.xlu0 %106
    %v108 = vsel %vm76, %v100, 0.0
    %109 = vadd.xlane.f32.xlu0 %v108
    %v110 = vpop.xlane.xlu0 %109
    %v111 = vsel %vm76, %v101, 0.0
    %112 = vadd.xlane.f32.xlu0 %v111
    %v113 = vpop.xlane.xlu0 %112
    %v114 = vmul.f32 %v104, %v89
    %v115 = vmul.f32 %v107, %v89
    %v116 = vmul.f32 %v110, %v89
    %v117 = vmul.f32 %v113, %v89
    %v118 = vadd.f32 %v114, 1e-05
    %v119 = vadd.f32 %v115, 1e-05
    %v120 = vadd.f32 %v116, 1e-05
    %v121 = vadd.f32 %v117, 1e-05
    %v122 = vrsqrt.pop %v118
    %v123 = vrsqrt.pop %v119
    %v124 = vrsqrt.pop %v120
    %v125 = vrsqrt.pop %v121
    %v126 = vmul.f32 %v94, %v122
    %v127 = vmul.f32 %v95, %v123
    %v128 = vmul.f32 %v96, %v124
    %v129 = vmul.f32 %v97, %v125
    %v130 = vlaneseq
    %v131 = vshrl.u32 %v130, 7
    %v132 = vsub.s32 0, %v131
    %v133 = vrot.slane %v70, %v132
    %v134 = vmul.f32 %v126, %v133
    %v135 = vmul.f32 %v127, %v133
    %v136 = vmul.f32 %v128, %v133
    %v137 = vmul.f32 %v129, %v133
    %v138 = vlaneseq
    %v139 = vshrl.u32 %v138, 7
    %v140 = vsub.s32 0, %v139
    %v141 = vrot.slane %v71, %v140
    %v142 = vadd.f32 %v134, %v141
    %v143 = vadd.f32 %v135, %v141
    %v144 = vadd.f32 %v136, %v141
    %v145 = vadd.f32 %v137, %v141
    %v146 = vpack.c.bf16 %v143, %v142
    %v147 = vpack.c.bf16 %v145, %v144
    %v148 = vld [vmem:[%s1] sm:$0xff]
    %v149 = vld [vmem:[%s1 + $0x8] sm:$0xff]
    %v150 = vld [vmem:[%s1 + $0x10] sm:$0xff]
    %v151 = vld [vmem:[%s1 + $0x18] sm:$0xff]
    %v152 = vld [vmem:[%s1 + $0x20] sm:$0xff]
    %v153 = vld [vmem:[%s1 + $0x28] sm:$0xff]
    %v154 = vld [vmem:[%s1 + $0x30] sm:$0xff]
    %v155 = vld [vmem:[%s1 + $0x38] sm:$0xff]
    %v164 = vunpack.c.l.b16 %v148
    %v165 = vunpack.c.h.b16 %v148
    %v166 = vunpack.c.l.b16 %v149
    %v167 = vunpack.c.h.b16 %v149
    %v168 = vunpack.c.l.b16 %v150
    %v169 = vunpack.c.h.b16 %v150
    %v170 = vunpack.c.l.b16 %v151
    %v171 = vunpack.c.h.b16 %v151
    %v172 = vunpack.c.l.b16 %v152
    %v173 = vunpack.c.h.b16 %v152
    %v174 = vunpack.c.l.b16 %v153
    %v175 = vunpack.c.h.b16 %v153
    %v176 = vunpack.c.l.b16 %v154
    %v177 = vunpack.c.h.b16 %v154
    %v178 = vunpack.c.l.b16 %v155
    %v179 = vunpack.c.h.b16 %v155
    %v180 = vpack.c.b16 %v166, %v164
    %v181 = vpack.c.b16 %v167, %v165
    %v182 = vpack.c.b16 %v170, %v168
    %v183 = vpack.c.b16 %v171, %v169
    %v184 = vpack.c.b16 %v174, %v172
    %v185 = vpack.c.b16 %v175, %v173
    %v186 = vpack.c.b16 %v178, %v176
    %v187 = vpack.c.b16 %v179, %v177
    %v197 = vsel %vm76, %v146, 0
    %v200 = vsel %vm76, %v147, 0
    %202 = vmatprep.subr.bf16.mxu0 %v181
    %203 = vmatpush1.bf16.msra.mxu0 %v180
    %204 = vmatprep.subr.bf16.mxu0 %v183
    %205 = vmatpush1.bf16.msra.mxu0 %v182
    %206 = vmatprep.subr.bf16.mxu0 %v185
    %207 = vmatpush1.bf16.msra.mxu0 %v184
    %208 = vmatprep.subr.bf16.mxu0 %v187
    %209 = vmatpush1.bf16.msra.mxu0 %v186
    %210 = vmatprep.subr.bf16.mxu0 0
    %211 = vmatpush1.bf16.msra.mxu0 0
    %212 = vmatprep.subr.bf16.mxu0 0
    %213 = vmatpush1.bf16.msra.mxu0 0
    %214 = vmatprep.subr.bf16.mxu0 0
    %215 = vmatpush1.bf16.msra.mxu0 0
    %216 = vmatprep.subr.bf16.mxu0 0
    %217 = vmatpush1.bf16.msra.mxu0 0
    %218 = vmatprep.subr.bf16.mxu0 0
    %219 = vmatpush1.bf16.msra.mxu0 0
    %220 = vmatprep.subr.bf16.mxu0 0
    %221 = vmatpush1.bf16.msra.mxu0 0
    %222 = vmatprep.subr.bf16.mxu0 0
    %223 = vmatpush1.bf16.msra.mxu0 0
    %224 = vmatprep.subr.bf16.mxu0 0
    %225 = vmatpush1.bf16.msra.mxu0 0
    %226 = vmatprep.subr.bf16.mxu0 0
    %227 = vmatpush1.bf16.msra.mxu0 0
    %228 = vmatprep.subr.bf16.mxu0 0
    %229 = vmatpush1.bf16.msra.mxu0 0
    %230 = vmatprep.subr.bf16.mxu0 0
    %231 = vmatpush1.bf16.msra.mxu0 0
    %232 = vmatprep.subr.bf16.mxu0 0
    %233 = vmatpush1.bf16.msra.mxu0 0
    %234 = vmatprep.mubr.bf16.mxu0 0
    %235 = vmatmul.mubr.bf16.gmra.mrb[0].mxu0 %v197
    %v236 = vpop.f32.mrb[0].mxu0
    %v237 = vadd.f32 0.0, %v236
    %v238 = vpop.f32.mrb[0].mxu0
    %v239 = vadd.f32 0.0, %v238
    %v240 = vpop.f32.mrb[0].mxu0
    %v241 = vadd.f32 0.0, %v240
    %v242 = vpop.f32.mrb[0].mxu0
    %v243 = vadd.f32 0.0, %v242
    %244 = vmatprep.mubr.bf16.mxu0 0
    %245 = vmatmul.mubr.bf16.gmra.mrb[0].mxu0 %v200
    %v246 = vpop.f32.mrb[0].mxu0
    %v247 = vadd.f32 0.0, %v246
    %v248 = vpop.f32.mrb[0].mxu0
    %v249 = vadd.f32 0.0, %v248
    %v250 = vpop.f32.mrb[0].mxu0
    %v251 = vadd.f32 0.0, %v250
    %v252 = vpop.f32.mrb[0].mxu0
    %v253 = vadd.f32 0.0, %v252
    %254 = vdwg.mxu0
    %v255 = vpack.c.bf16 %v241, %v237
    %v256 = vpack.c.bf16 %v251, %v247
    %v257 = vpack.c.bf16 %v243, %v239
    %v258 = vpack.c.bf16 %v253, %v249
    %v291 = vunpack.c.l.b16 %v38
    %v292 = vunpack.c.l.b16 %v39
    %v293 = vunpack.c.l.b16 %v40
    %v294 = vunpack.c.l.b16 %v41
    %v295 = vunpack.c.l.b16 %v42
    %v296 = vunpack.c.l.b16 %v43
    %v297 = vunpack.c.l.b16 %v44
    %v298 = vunpack.c.l.b16 %v45
    %v299 = vunpack.c.l.b16 %v46
    %v300 = vunpack.c.l.b16 %v47
    %v301 = vunpack.c.l.b16 %v48
    %v302 = vunpack.c.l.b16 %v49
    %v303 = vunpack.c.l.b16 %v50
    %v304 = vunpack.c.l.b16 %v51
    %v305 = vunpack.c.l.b16 %v52
    %v306 = vunpack.c.l.b16 %v53
    %v307 = vunpack.c.l.b16 %v54
    %v308 = vunpack.c.l.b16 %v55
    %v309 = vunpack.c.l.b16 %v56
    %v310 = vunpack.c.l.b16 %v57
    %v311 = vunpack.c.l.b16 %v58
    %v312 = vunpack.c.l.b16 %v59
    %v313 = vunpack.c.l.b16 %v60
    %v314 = vunpack.c.l.b16 %v61
    %v315 = vunpack.c.l.b16 %v62
    %v316 = vunpack.c.l.b16 %v63
    %v317 = vunpack.c.l.b16 %v64
    %v318 = vunpack.c.l.b16 %v65
    %v319 = vunpack.c.l.b16 %v66
    %v320 = vunpack.c.l.b16 %v67
    %v321 = vunpack.c.l.b16 %v68
    %v322 = vunpack.c.l.b16 %v69
    %v323 = vpack.c.b16 %v292, %v291
    %v324 = vpack.c.b16 %v294, %v293
    %v325 = vpack.c.b16 %v296, %v295
    %v326 = vpack.c.b16 %v298, %v297
    %v327 = vpack.c.b16 %v300, %v299
    %v328 = vpack.c.b16 %v302, %v301
    %v329 = vpack.c.b16 %v304, %v303
    %v330 = vpack.c.b16 %v306, %v305
    %v331 = vpack.c.b16 %v308, %v307
    %v332 = vpack.c.b16 %v310, %v309
    %v333 = vpack.c.b16 %v312, %v311
    %v334 = vpack.c.b16 %v314, %v313
    %v335 = vpack.c.b16 %v316, %v315
    %v336 = vpack.c.b16 %v318, %v317
    %v337 = vpack.c.b16 %v320, %v319
    %v338 = vpack.c.b16 %v322, %v321
    %339 = vrot.lane.b32.xlu0 %v323, 64
    %v340 = vpop.permute.xlu0 %339
    %341 = vrot.lane.b32.xlu0 %v324, 64
    %v342 = vpop.permute.xlu0 %341
    %343 = vrot.lane.b32.xlu0 %v325, 64
    %v344 = vpop.permute.xlu0 %343
    %345 = vrot.lane.b32.xlu0 %v326, 64
    %v346 = vpop.permute.xlu0 %345
    %347 = vrot.lane.b32.xlu0 %v327, 64
    %v348 = vpop.permute.xlu0 %347
    %349 = vrot.lane.b32.xlu0 %v328, 64
    %v350 = vpop.permute.xlu0 %349
    %351 = vrot.lane.b32.xlu0 %v329, 64
    %v352 = vpop.permute.xlu0 %351
    %353 = vrot.lane.b32.xlu0 %v330, 64
    %v354 = vpop.permute.xlu0 %353
    %355 = vrot.lane.b32.xlu0 %v331, 64
    %v356 = vpop.permute.xlu0 %355
    %357 = vrot.lane.b32.xlu0 %v332, 64
    %v358 = vpop.permute.xlu0 %357
    %359 = vrot.lane.b32.xlu0 %v333, 64
    %v360 = vpop.permute.xlu0 %359
    %361 = vrot.lane.b32.xlu0 %v334, 64
    %v362 = vpop.permute.xlu0 %361
    %363 = vrot.lane.b32.xlu0 %v335, 64
    %v364 = vpop.permute.xlu0 %363
    %365 = vrot.lane.b32.xlu0 %v336, 64
    %v366 = vpop.permute.xlu0 %365
    %367 = vrot.lane.b32.xlu0 %v337, 64
    %v368 = vpop.permute.xlu0 %367
    %369 = vrot.lane.b32.xlu0 %v338, 64
    %v370 = vpop.permute.xlu0 %369
    %v387 = vmul.bf16 %v255, %v340
    %v388 = vmul.bf16 %v256, %v342
    %v389 = vmul.bf16 %v255, %v344
    %v390 = vmul.bf16 %v256, %v346
    %v391 = vmul.bf16 %v255, %v348
    %v392 = vmul.bf16 %v256, %v350
    %v393 = vmul.bf16 %v255, %v352
    %v394 = vmul.bf16 %v256, %v354
    %v395 = vmul.bf16 %v255, %v356
    %v396 = vmul.bf16 %v256, %v358
    %v397 = vmul.bf16 %v255, %v360
    %v398 = vmul.bf16 %v256, %v362
    %v399 = vmul.bf16 %v255, %v364
    %v400 = vmul.bf16 %v256, %v366
    %v401 = vmul.bf16 %v255, %v368
    %v402 = vmul.bf16 %v256, %v370
    %v419 = vmul.bf16 %v257, %v323
    %v420 = vmul.bf16 %v258, %v324
    %v421 = vmul.bf16 %v257, %v325
    %v422 = vmul.bf16 %v258, %v326
    %v423 = vmul.bf16 %v257, %v327
    %v424 = vmul.bf16 %v258, %v328
    %v425 = vmul.bf16 %v257, %v329
    %v426 = vmul.bf16 %v258, %v330
    %v427 = vmul.bf16 %v257, %v331
    %v428 = vmul.bf16 %v258, %v332
    %v429 = vmul.bf16 %v257, %v333
    %v430 = vmul.bf16 %v258, %v334
    %v431 = vmul.bf16 %v257, %v335
    %v432 = vmul.bf16 %v258, %v336
    %v433 = vmul.bf16 %v257, %v337
    %v434 = vmul.bf16 %v258, %v338
    %v435 = vld [vmem:[%s6] sm:$0xff]
    %v436 = vld [vmem:[%s6 + $0x8] sm:$0xff]
    %v437 = vld [vmem:[%s6 + $0x10] sm:$0xff]
    %v438 = vld [vmem:[%s6 + $0x18] sm:$0xff]
    %v439 = vld [vmem:[%s6 + $0x20] sm:$0xff]
    %v440 = vld [vmem:[%s6 + $0x28] sm:$0xff]
    %v441 = vld [vmem:[%s6 + $0x30] sm:$0xff]
    %v442 = vld [vmem:[%s6 + $0x38] sm:$0xff]
    %459 = vrot.lane.b32.xlu0 %v387, 64
    %v460 = vpop.permute.xlu0 %459
    %461 = vrot.lane.b32.xlu0 %v388, 64
    %v462 = vpop.permute.xlu0 %461
    %463 = vrot.lane.b32.xlu0 %v389, 64
    %v464 = vpop.permute.xlu0 %463
    %465 = vrot.lane.b32.xlu0 %v390, 64
    %v466 = vpop.permute.xlu0 %465
    %467 = vrot.lane.b32.xlu0 %v391, 64
    %v468 = vpop.permute.xlu0 %467
    %469 = vrot.lane.b32.xlu0 %v392, 64
    %v470 = vpop.permute.xlu0 %469
    %471 = vrot.lane.b32.xlu0 %v393, 64
    %v472 = vpop.permute.xlu0 %471
    %473 = vrot.lane.b32.xlu0 %v394, 64
    %v474 = vpop.permute.xlu0 %473
    %475 = vrot.lane.b32.xlu0 %v395, 64
    %v476 = vpop.permute.xlu0 %475
    %477 = vrot.lane.b32.xlu0 %v396, 64
    %v478 = vpop.permute.xlu0 %477
    %479 = vrot.lane.b32.xlu0 %v397, 64
    %v480 = vpop.permute.xlu0 %479
    %481 = vrot.lane.b32.xlu0 %v398, 64
    %v482 = vpop.permute.xlu0 %481
    %483 = vrot.lane.b32.xlu0 %v399, 64
    %v484 = vpop.permute.xlu0 %483
    %485 = vrot.lane.b32.xlu0 %v400, 64
    %v486 = vpop.permute.xlu0 %485
    %487 = vrot.lane.b32.xlu0 %v401, 64
    %v488 = vpop.permute.xlu0 %487
    %489 = vrot.lane.b32.xlu0 %v402, 64
    %v490 = vpop.permute.xlu0 %489
    %v492 = vsel %vm76, %v255, 0
    %v495 = vsel %vm76, %v256, 0
    %v498 = vsel %vm76, %v460, 0
    %v501 = vsel %vm76, %v462, 0
    %v504 = vsel %vm76, %v464, 0
    %v507 = vsel %vm76, %v466, 0
    %v510 = vsel %vm76, %v468, 0
    %v513 = vsel %vm76, %v470, 0
    %v516 = vsel %vm76, %v472, 0
    %v519 = vsel %vm76, %v474, 0
    %v522 = vsel %vm76, %v476, 0
    %v525 = vsel %vm76, %v478, 0
    %v528 = vsel %vm76, %v480, 0
    %v531 = vsel %vm76, %v482, 0
    %v534 = vsel %vm76, %v484, 0
    %v537 = vsel %vm76, %v486, 0
    %v540 = vsel %vm76, %v488, 0
    %v543 = vsel %vm76, %v490, 0
    %545 = vmatprep.subr.bf16.mxu0 0
    %546 = vmatpush1.bf16.xpose.msra.mxu0 %v498
    %547 = vmatprep.subr.bf16.mxu0 0
    %548 = vmatpush1.bf16.xpose.msra.mxu0 %v501
    %549 = vmatprep.subr.bf16.mxu0 0
    %550 = vmatpush1.bf16.xpose.msra.mxu0 %v504
    %551 = vmatprep.subr.bf16.mxu0 0
    %552 = vmatpush1.bf16.xpose.msra.mxu0 %v507
    %553 = vmatprep.subr.bf16.mxu0 0
    %554 = vmatpush1.bf16.xpose.msra.mxu0 %v510
    %555 = vmatprep.subr.bf16.mxu0 0
    %556 = vmatpush1.bf16.xpose.msra.mxu0 %v513
    %557 = vmatprep.subr.bf16.mxu0 0
    %558 = vmatpush1.bf16.xpose.msra.mxu0 %v516
    %559 = vmatprep.subr.bf16.mxu0 0
    %560 = vmatpush1.bf16.xpose.msra.mxu0 %v519
    %561 = vmatprep.subr.bf16.mxu0 0
    %562 = vmatpush1.bf16.xpose.msra.mxu0 %v522
    %563 = vmatprep.subr.bf16.mxu0 0
    %564 = vmatpush1.bf16.xpose.msra.mxu0 %v525
    %565 = vmatprep.subr.bf16.mxu0 0
    %566 = vmatpush1.bf16.xpose.msra.mxu0 %v528
    %567 = vmatprep.subr.bf16.mxu0 0
    %568 = vmatpush1.bf16.xpose.msra.mxu0 %v531
    %569 = vmatprep.subr.bf16.mxu0 0
    %570 = vmatpush1.bf16.xpose.msra.mxu0 %v534
    %571 = vmatprep.subr.bf16.mxu0 0
    %572 = vmatpush1.bf16.xpose.msra.mxu0 %v537
    %573 = vmatprep.subr.bf16.mxu0 0
    %574 = vmatpush1.bf16.xpose.msra.mxu0 %v540
    %575 = vmatprep.subr.bf16.mxu0 0
    %576 = vmatpush1.bf16.xpose.msra.mxu0 %v543
    %577 = vmatprep.mubr.bf16.mxu0 0
    %578 = vmatmul.mubr.bf16.gmra.mrb[0].mxu0 %v492
    %v579 = vpop.f32.mrb[0].mxu0
    %v580 = vadd.f32 %v435, %v579
    %v581 = vpop.f32.mrb[0].mxu0
    %v582 = vadd.f32 %v436, %v581
    %v583 = vpop.f32.mrb[0].mxu0
    %v584 = vadd.f32 %v437, %v583
    %v585 = vpop.f32.mrb[0].mxu0
    %v586 = vadd.f32 %v438, %v585
    %587 = vmatprep.mubr.bf16.mxu0 0
    %588 = vmatmul.mubr.bf16.gmra.mrb[0].mxu0 %v495
    %v589 = vpop.f32.mrb[0].mxu0
    %v590 = vadd.f32 %v439, %v589
    %v591 = vpop.f32.mrb[0].mxu0
    %v592 = vadd.f32 %v440, %v591
    %v593 = vpop.f32.mrb[0].mxu0
    %v594 = vadd.f32 %v441, %v593
    %v595 = vpop.f32.mrb[0].mxu0
    %v596 = vadd.f32 %v442, %v595
    %597 = vdwg.mxu0
    %v598 = vmax.f32 %v580, %v582
    %599 = vmax.xlane.f32.xlu0 %v598
    %v600 = vpop.xlane.xlu0 %599
    %v601 = vmax.f32 %v584, %v586
    %602 = vmax.xlane.f32.xlu0 %v601
    %v603 = vpop.xlane.xlu0 %602
    %v604 = vmax.f32 %v590, %v592
    %605 = vmax.xlane.f32.xlu0 %v604
    %v606 = vpop.xlane.xlu0 %605
    %v607 = vmax.f32 %v594, %v596
    %608 = vmax.xlane.f32.xlu0 %v607
    %v609 = vpop.xlane.xlu0 %608
    %v610 = vsub.f32 %v580, %v600
    %v611 = vsub.f32 %v582, %v600
    %v612 = vsub.f32 %v584, %v603
    %v613 = vsub.f32 %v586, %v603
    %v614 = vsub.f32 %v590, %v606
    %v615 = vsub.f32 %v592, %v606
    %v616 = vsub.f32 %v594, %v609
    %v617 = vsub.f32 %v596, %v609
    %v618 = vmul.f32 %v610, 1.442695
    %v619 = vpow.pop %v618
    %v620 = vmul.f32 %v611, 1.442695
    %v621 = vpow.pop %v620
    %v622 = vmul.f32 %v612, 1.442695
    %v623 = vpow.pop %v622
    %v624 = vmul.f32 %v613, 1.442695
    %v625 = vpow.pop %v624
    %v626 = vmul.f32 %v614, 1.442695
    %v627 = vpow.pop %v626
    %v628 = vmul.f32 %v615, 1.442695
    %v629 = vpow.pop %v628
    %v630 = vmul.f32 %v616, 1.442695
    %v631 = vpow.pop %v630
    %v632 = vmul.f32 %v617, 1.442695
    %v633 = vpow.pop %v632
    %v634 = vpack.c.bf16 %v623, %v619
    %v635 = vpack.c.bf16 %v625, %v621
    %v636 = vpack.c.bf16 %v631, %v627
    %v637 = vpack.c.bf16 %v633, %v629
    %638 = vmatprep.subr.bf16.mxu0 0
    %639 = vmatpush1.bf16.msra.mxu0 %v419
    %640 = vmatprep.subr.bf16.mxu0 0
    %641 = vmatpush1.bf16.msra.mxu0 %v420
    %642 = vmatprep.subr.bf16.mxu0 0
    %643 = vmatpush1.bf16.msra.mxu0 %v421
    %644 = vmatprep.subr.bf16.mxu0 0
    %645 = vmatpush1.bf16.msra.mxu0 %v422
    %646 = vmatprep.subr.bf16.mxu0 0
    %647 = vmatpush1.bf16.msra.mxu0 %v423
    %648 = vmatprep.subr.bf16.mxu0 0
    %649 = vmatpush1.bf16.msra.mxu0 %v424
    %650 = vmatprep.subr.bf16.mxu0 0
    %651 = vmatpush1.bf16.msra.mxu0 %v425
    %652 = vmatprep.subr.bf16.mxu0 0
    %653 = vmatpush1.bf16.msra.mxu0 %v426
    %654 = vmatprep.subr.bf16.mxu0 0
    %655 = vmatpush1.bf16.msra.mxu0 %v427
    %656 = vmatprep.subr.bf16.mxu0 0
    %657 = vmatpush1.bf16.msra.mxu0 %v428
    %658 = vmatprep.subr.bf16.mxu0 0
    %659 = vmatpush1.bf16.msra.mxu0 %v429
    %660 = vmatprep.subr.bf16.mxu0 0
    %661 = vmatpush1.bf16.msra.mxu0 %v430
    %662 = vmatprep.subr.bf16.mxu0 0
    %663 = vmatpush1.bf16.msra.mxu0 %v431
    %664 = vmatprep.subr.bf16.mxu0 0
    %665 = vmatpush1.bf16.msra.mxu0 %v432
    %666 = vmatprep.subr.bf16.mxu0 0
    %667 = vmatpush1.bf16.msra.mxu0 %v433
    %668 = vmatprep.subr.bf16.mxu0 0
    %669 = vmatpush1.bf16.msra.mxu0 %v434
    %670 = vmatprep.mubr.bf16.mxu0 %v635
    %671 = vmatmul.mubr.bf16.gmra.mrb[0].mxu0 %v634
    %v672 = vpop.f32.mrb[0].mxu0
    %v673 = vadd.f32 0.0, %v672
    %v674 = vpop.f32.mrb[0].mxu0
    %v675 = vpop.f32.mrb[0].mxu0
    %v676 = vadd.f32 0.0, %v675
    %v677 = vpop.f32.mrb[0].mxu0
    %678 = vmatprep.mubr.bf16.mxu0 %v637
    %679 = vmatmul.mubr.bf16.gmra.mrb[0].mxu0 %v636
    %v680 = vpop.f32.mrb[0].mxu0
    %v681 = vadd.f32 0.0, %v680
    %v682 = vpop.f32.mrb[0].mxu0
    %v683 = vpop.f32.mrb[0].mxu0
    %v684 = vadd.f32 0.0, %v683
    %v685 = vpop.f32.mrb[0].mxu0
    %686 = vdwg.mxu0
    %687 = vmatprep.subr.bf16.mxu0 0
    %688 = vmatpush1.bf16.msra.mxu0 %v323
    %689 = vmatprep.subr.bf16.mxu0 0
    %690 = vmatpush1.bf16.msra.mxu0 %v324
    %691 = vmatprep.subr.bf16.mxu0 0
    %692 = vmatpush1.bf16.msra.mxu0 %v325
    %693 = vmatprep.subr.bf16.mxu0 0
    %694 = vmatpush1.bf16.msra.mxu0 %v326
    %695 = vmatprep.subr.bf16.mxu0 0
    %696 = vmatpush1.bf16.msra.mxu0 %v327
    %697 = vmatprep.subr.bf16.mxu0 0
    %698 = vmatpush1.bf16.msra.mxu0 %v328
    %699 = vmatprep.subr.bf16.mxu0 0
    %700 = vmatpush1.bf16.msra.mxu0 %v329
    %701 = vmatprep.subr.bf16.mxu0 0
    %702 = vmatpush1.bf16.msra.mxu0 %v330
    %703 = vmatprep.subr.bf16.mxu0 0
    %704 = vmatpush1.bf16.msra.mxu0 %v331
    %705 = vmatprep.subr.bf16.mxu0 0
    %706 = vmatpush1.bf16.msra.mxu0 %v332
    %707 = vmatprep.subr.bf16.mxu0 0
    %708 = vmatpush1.bf16.msra.mxu0 %v333
    %709 = vmatprep.subr.bf16.mxu0 0
    %710 = vmatpush1.bf16.msra.mxu0 %v334
    %711 = vmatprep.subr.bf16.mxu0 0
    %712 = vmatpush1.bf16.msra.mxu0 %v335
    %713 = vmatprep.subr.bf16.mxu0 0
    %714 = vmatpush1.bf16.msra.mxu0 %v336
    %715 = vmatprep.subr.bf16.mxu0 0
    %716 = vmatpush1.bf16.msra.mxu0 %v337
    %717 = vmatprep.subr.bf16.mxu0 0
    %718 = vmatpush1.bf16.msra.mxu0 %v338
    %719 = vmatprep.mubr.bf16.mxu0 %v635
    %720 = vmatmul.mubr.bf16.gmra.mrb[0].mxu0 %v634
    %v721 = vpop.f32.mrb[0].mxu0
    %v722 = vadd.f32 0.0, %v721
    %v723 = vpop.f32.mrb[0].mxu0
    %v724 = vpop.f32.mrb[0].mxu0
    %v725 = vadd.f32 0.0, %v724
    %v726 = vpop.f32.mrb[0].mxu0
    %727 = vmatprep.mubr.bf16.mxu0 %v637
    %728 = vmatmul.mubr.bf16.gmra.mrb[0].mxu0 %v636
    %v729 = vpop.f32.mrb[0].mxu0
    %v730 = vadd.f32 0.0, %v729
    %v731 = vpop.f32.mrb[0].mxu0
    %v732 = vpop.f32.mrb[0].mxu0
    %v733 = vadd.f32 0.0, %v732
    %v734 = vpop.f32.mrb[0].mxu0
    %735 = vdwg.mxu0
    %v736 = vrcp.pop %v722
    %v737 = vrcp.pop %v725
    %v738 = vrcp.pop %v730
    %v739 = vrcp.pop %v733
    %v740 = vmul.f32 %v673, %v736
    %v741 = vmul.f32 %v676, %v737
    %v742 = vmul.f32 %v681, %v738
    %v743 = vmul.f32 %v684, %v739
    %v744 = vpack.c.bf16 %v741, %v740
    %v745 = vpack.c.bf16 %v743, %v742
    %v746 = vld [vmem:[%s2] sm:$0xf]
    %v747 = vld [vmem:[%s2 + $0x4] sm:$0xf]
    %v748 = vld [vmem:[%s2 + $0x8] sm:$0xf]
    %v749 = vld [vmem:[%s2 + $0xc] sm:$0xf]
    %v750 = vld [vmem:[%s2 + $0x10] sm:$0xf]
    %v751 = vld [vmem:[%s2 + $0x14] sm:$0xf]
    %v752 = vld [vmem:[%s2 + $0x18] sm:$0xf]
    %v753 = vld [vmem:[%s2 + $0x1c] sm:$0xf]
    %v754 = vlaneseq
    %v755 = vshrl.u32 %v754, 7
    %v756 = vsub.s32 0, %v755
    %v757 = vrot.slane %v74, %v756
    %v766 = vunpack.c.l.b16 %v746
    %v767 = vunpack.c.l.b16 %v747
    %v768 = vunpack.c.l.b16 %v748
    %v769 = vunpack.c.l.b16 %v749
    %v770 = vunpack.c.l.b16 %v750
    %v771 = vunpack.c.l.b16 %v751
    %v772 = vunpack.c.l.b16 %v752
    %v773 = vunpack.c.l.b16 %v753
    %v774 = vpack.c.b16 %v767, %v766
    %v775 = vpack.c.b16 %v769, %v768
    %v776 = vpack.c.b16 %v771, %v770
    %v777 = vpack.c.b16 %v773, %v772
    %v783 = vsel %vm76, %v744, 0
    %v786 = vsel %vm76, %v745, 0
    %788 = vmatprep.subr.bf16.mxu0 0
    %789 = vmatpush1.bf16.msra.mxu0 %v774
    %790 = vmatprep.subr.bf16.mxu0 0
    %791 = vmatpush1.bf16.msra.mxu0 %v775
    %792 = vmatprep.subr.bf16.mxu0 0
    %793 = vmatpush1.bf16.msra.mxu0 %v776
    %794 = vmatprep.subr.bf16.mxu0 0
    %795 = vmatpush1.bf16.msra.mxu0 %v777
    %796 = vmatprep.subr.bf16.mxu0 0
    %797 = vmatpush1.bf16.msra.mxu0 0
    %798 = vmatprep.subr.bf16.mxu0 0
    %799 = vmatpush1.bf16.msra.mxu0 0
    %800 = vmatprep.subr.bf16.mxu0 0
    %801 = vmatpush1.bf16.msra.mxu0 0
    %802 = vmatprep.subr.bf16.mxu0 0
    %803 = vmatpush1.bf16.msra.mxu0 0
    %804 = vmatprep.subr.bf16.mxu0 0
    %805 = vmatpush1.bf16.msra.mxu0 0
    %806 = vmatprep.subr.bf16.mxu0 0
    %807 = vmatpush1.bf16.msra.mxu0 0
    %808 = vmatprep.subr.bf16.mxu0 0
    %809 = vmatpush1.bf16.msra.mxu0 0
    %810 = vmatprep.subr.bf16.mxu0 0
    %811 = vmatpush1.bf16.msra.mxu0 0
    %812 = vmatprep.subr.bf16.mxu0 0
    %813 = vmatpush1.bf16.msra.mxu0 0
    %814 = vmatprep.subr.bf16.mxu0 0
    %815 = vmatpush1.bf16.msra.mxu0 0
    %816 = vmatprep.subr.bf16.mxu0 0
    %817 = vmatpush1.bf16.msra.mxu0 0
    %818 = vmatprep.subr.bf16.mxu0 0
    %819 = vmatpush1.bf16.msra.mxu0 0
    %820 = vmatprep.mubr.bf16.mxu0 0
    %821 = vmatmul.mubr.bf16.gmra.mrb[0].mxu0 %v783
    %v822 = vpop.f32.mrb[0].mxu0
    %v823 = vadd.f32 %v757, %v822
    %v824 = vpop.f32.mrb[0].mxu0
    %v825 = vpop.f32.mrb[0].mxu0
    %v826 = vadd.f32 %v757, %v825
    %v827 = vpop.f32.mrb[0].mxu0
    %828 = vmatprep.mubr.bf16.mxu0 0
    %829 = vmatmul.mubr.bf16.gmra.mrb[0].mxu0 %v786
    %v830 = vpop.f32.mrb[0].mxu0
    %v831 = vadd.f32 %v757, %v830
    %v832 = vpop.f32.mrb[0].mxu0
    %v833 = vpop.f32.mrb[0].mxu0
    %v834 = vadd.f32 %v757, %v833
    %v835 = vpop.f32.mrb[0].mxu0
    %836 = vdwg.mxu0
    %v837 = vadd.f32 %v34, %v823
    %v838 = vadd.f32 %v35, %v826
    %v839 = vadd.f32 %v36, %v831
    %v840 = vadd.f32 %v37, %v834
    %v841 = vsel %vm76, %v837, 0.0
    %842 = vadd.xlane.f32.xlu0 %v841
    %v843 = vpop.xlane.xlu0 %842
    %v844 = vsel %vm76, %v838, 0.0
    %845 = vadd.xlane.f32.xlu0 %v844
    %v846 = vpop.xlane.xlu0 %845
    %v847 = vsel %vm76, %v839, 0.0
    %848 = vadd.xlane.f32.xlu0 %v847
    %v849 = vpop.xlane.xlu0 %848
    %v850 = vsel %vm76, %v840, 0.0
    %851 = vadd.xlane.f32.xlu0 %v850
    %v852 = vpop.xlane.xlu0 %851
    %v853 = vmul.f32 %v843, %v89
    %v854 = vmul.f32 %v846, %v89
    %v855 = vmul.f32 %v849, %v89
    %v856 = vmul.f32 %v852, %v89
    %v857 = vsub.f32 %v837, %v853
    %v858 = vsub.f32 %v838, %v854
    %v859 = vsub.f32 %v839, %v855
    %v860 = vsub.f32 %v840, %v856
    %v861 = vmul.f32 %v857, %v857
    %v862 = vmul.f32 %v858, %v858
    %v863 = vmul.f32 %v859, %v859
    %v864 = vmul.f32 %v860, %v860
    %v865 = vsel %vm76, %v861, 0.0
    %866 = vadd.xlane.f32.xlu0 %v865
    %v867 = vpop.xlane.xlu0 %866
    %v868 = vsel %vm76, %v862, 0.0
    %869 = vadd.xlane.f32.xlu0 %v868
    %v870 = vpop.xlane.xlu0 %869
    %v871 = vsel %vm76, %v863, 0.0
    %872 = vadd.xlane.f32.xlu0 %v871
    %v873 = vpop.xlane.xlu0 %872
    %v874 = vsel %vm76, %v864, 0.0
    %875 = vadd.xlane.f32.xlu0 %v874
    %v876 = vpop.xlane.xlu0 %875
    %v877 = vmul.f32 %v867, %v89
    %v878 = vmul.f32 %v870, %v89
    %v879 = vmul.f32 %v873, %v89
    %v880 = vmul.f32 %v876, %v89
    %v881 = vadd.f32 %v877, 1e-05
    %v882 = vadd.f32 %v878, 1e-05
    %v883 = vadd.f32 %v879, 1e-05
    %v884 = vadd.f32 %v880, 1e-05
    %v885 = vrsqrt.pop %v881
    %v886 = vrsqrt.pop %v882
    %v887 = vrsqrt.pop %v883
    %v888 = vrsqrt.pop %v884
    %v889 = vmul.f32 %v857, %v885
    %v890 = vmul.f32 %v858, %v886
    %v891 = vmul.f32 %v859, %v887
    %v892 = vmul.f32 %v860, %v888
    %v893 = vlaneseq
    %v894 = vshrl.u32 %v893, 7
    %v895 = vsub.s32 0, %v894
    %v896 = vrot.slane %v72, %v895
    %v897 = vmul.f32 %v889, %v896
    %v898 = vmul.f32 %v890, %v896
    %v899 = vmul.f32 %v891, %v896
    %v900 = vmul.f32 %v892, %v896
    %v901 = vlaneseq
    %v902 = vshrl.u32 %v901, 7
    %v903 = vsub.s32 0, %v902
    %v904 = vrot.slane %v73, %v903
    %v905 = vadd.f32 %v897, %v904
    %v906 = vadd.f32 %v898, %v904
    %v907 = vadd.f32 %v899, %v904
    %v908 = vadd.f32 %v900, %v904
    %v909 = vpack.c.bf16 %v906, %v905
    %v910 = vpack.c.bf16 %v908, %v907
    %v911 = vld [vmem:[%s3] sm:$0xff]
    %v912 = vld [vmem:[%s3 + $0x8] sm:$0xff]
    %v913 = vld [vmem:[%s3 + $0x10] sm:$0xff]
    %v914 = vld [vmem:[%s3 + $0x18] sm:$0xff]
    %v915 = vld [vmem:[%s3 + $0x20] sm:$0xff]
    %v916 = vld [vmem:[%s3 + $0x28] sm:$0xff]
    %v917 = vld [vmem:[%s3 + $0x30] sm:$0xff]
    %v918 = vld [vmem:[%s3 + $0x38] sm:$0xff]
    %v919 = vld [vmem:[%s8] sm:$0x3]
    %v921 = vlaneseq
    %v922 = vshrl.u32 %v921, 7
    %v923 = vsub.s32 0, %v922
    %v924 = vrot.slane %v919, %v923
    %v925 = vlaneseq
    %v926 = vshrl.u32 %v925, 7
    %v927 = vsub.s32 1, %v926
    %v928 = vrot.slane %v919, %v927
    %v939 = vunpack.c.l.b16 %v911
    %v940 = vunpack.c.h.b16 %v911
    %v941 = vunpack.c.l.b16 %v912
    %v942 = vunpack.c.h.b16 %v912
    %v943 = vunpack.c.l.b16 %v913
    %v944 = vunpack.c.h.b16 %v913
    %v945 = vunpack.c.l.b16 %v914
    %v946 = vunpack.c.h.b16 %v914
    %v947 = vunpack.c.l.b16 %v915
    %v948 = vunpack.c.h.b16 %v915
    %v949 = vunpack.c.l.b16 %v916
    %v950 = vunpack.c.h.b16 %v916
    %v951 = vunpack.c.l.b16 %v917
    %v952 = vunpack.c.h.b16 %v917
    %v953 = vunpack.c.l.b16 %v918
    %v954 = vunpack.c.h.b16 %v918
    %v955 = vpack.c.b16 %v941, %v939
    %v956 = vpack.c.b16 %v942, %v940
    %v957 = vpack.c.b16 %v945, %v943
    %v958 = vpack.c.b16 %v946, %v944
    %v959 = vpack.c.b16 %v949, %v947
    %v960 = vpack.c.b16 %v950, %v948
    %v961 = vpack.c.b16 %v953, %v951
    %v962 = vpack.c.b16 %v954, %v952
    %v972 = vsel %vm76, %v909, 0
    %v975 = vsel %vm76, %v910, 0
    %977 = vmatprep.subr.bf16.mxu0 %v956
    %978 = vmatpush1.bf16.msra.mxu0 %v955
    %979 = vmatprep.subr.bf16.mxu0 %v958
    %980 = vmatpush1.bf16.msra.mxu0 %v957
    %981 = vmatprep.subr.bf16.mxu0 %v960
    %982 = vmatpush1.bf16.msra.mxu0 %v959
    %983 = vmatprep.subr.bf16.mxu0 %v962
    %984 = vmatpush1.bf16.msra.mxu0 %v961
    %985 = vmatprep.subr.bf16.mxu0 0
    %986 = vmatpush1.bf16.msra.mxu0 0
    %987 = vmatprep.subr.bf16.mxu0 0
    %988 = vmatpush1.bf16.msra.mxu0 0
    %989 = vmatprep.subr.bf16.mxu0 0
    %990 = vmatpush1.bf16.msra.mxu0 0
    %991 = vmatprep.subr.bf16.mxu0 0
    %992 = vmatpush1.bf16.msra.mxu0 0
    %993 = vmatprep.subr.bf16.mxu0 0
    %994 = vmatpush1.bf16.msra.mxu0 0
    %995 = vmatprep.subr.bf16.mxu0 0
    %996 = vmatpush1.bf16.msra.mxu0 0
    %997 = vmatprep.subr.bf16.mxu0 0
    %998 = vmatpush1.bf16.msra.mxu0 0
    %999 = vmatprep.subr.bf16.mxu0 0
    %1000 = vmatpush1.bf16.msra.mxu0 0
    %1001 = vmatprep.subr.bf16.mxu0 0
    %1002 = vmatpush1.bf16.msra.mxu0 0
    %1003 = vmatprep.subr.bf16.mxu0 0
    %1004 = vmatpush1.bf16.msra.mxu0 0
    %1005 = vmatprep.subr.bf16.mxu0 0
    %1006 = vmatpush1.bf16.msra.mxu0 0
    %1007 = vmatprep.subr.bf16.mxu0 0
    %1008 = vmatpush1.bf16.msra.mxu0 0
    %1009 = vmatprep.mubr.bf16.mxu0 0
    %1010 = vmatmul.mubr.bf16.gmra.mrb[0].mxu0 %v972
    %v1011 = vpop.f32.mrb[0].mxu0
    %v1012 = vadd.f32 %v924, %v1011
    %v1013 = vpop.f32.mrb[0].mxu0
    %v1014 = vadd.f32 %v928, %v1013
    %v1015 = vpop.f32.mrb[0].mxu0
    %v1016 = vadd.f32 %v924, %v1015
    %v1017 = vpop.f32.mrb[0].mxu0
    %v1018 = vadd.f32 %v928, %v1017
    %1019 = vmatprep.mubr.bf16.mxu0 0
    %1020 = vmatmul.mubr.bf16.gmra.mrb[0].mxu0 %v975
    %v1021 = vpop.f32.mrb[0].mxu0
    %v1022 = vadd.f32 %v924, %v1021
    %v1023 = vpop.f32.mrb[0].mxu0
    %v1024 = vadd.f32 %v928, %v1023
    %v1025 = vpop.f32.mrb[0].mxu0
    %v1026 = vadd.f32 %v924, %v1025
    %v1027 = vpop.f32.mrb[0].mxu0
    %v1028 = vadd.f32 %v928, %v1027
    %1029 = vdwg.mxu0
    %v1030 = vmul.f32 %v1012, 0.5
    %v1031 = vmul.f32 %v1014, 0.5
    %v1032 = vmul.f32 %v1016, 0.5
    %v1033 = vmul.f32 %v1018, 0.5
    %v1034 = vmul.f32 %v1022, 0.5
    %v1035 = vmul.f32 %v1024, 0.5
    %v1036 = vmul.f32 %v1026, 0.5
    %v1037 = vmul.f32 %v1028, 0.5
    %v1038 = vmul.f32 %v1012, 0.044715
    %v1039 = vmul.f32 %v1014, 0.044715
    %v1040 = vmul.f32 %v1016, 0.044715
    %v1041 = vmul.f32 %v1018, 0.044715
    %v1042 = vmul.f32 %v1022, 0.044715
    %v1043 = vmul.f32 %v1024, 0.044715
    %v1044 = vmul.f32 %v1026, 0.044715
    %v1045 = vmul.f32 %v1028, 0.044715
    %v1046 = vmul.f32 %v1038, %v1012
    %v1047 = vmul.f32 %v1039, %v1014
    %v1048 = vmul.f32 %v1040, %v1016
    %v1049 = vmul.f32 %v1041, %v1018
    %v1050 = vmul.f32 %v1042, %v1022
    %v1051 = vmul.f32 %v1043, %v1024
    %v1052 = vmul.f32 %v1044, %v1026
    %v1053 = vmul.f32 %v1045, %v1028
    %v1054 = vmul.f32 %v1046, %v1012
    %v1055 = vmul.f32 %v1047, %v1014
    %v1056 = vmul.f32 %v1048, %v1016
    %v1057 = vmul.f32 %v1049, %v1018
    %v1058 = vmul.f32 %v1050, %v1022
    %v1059 = vmul.f32 %v1051, %v1024
    %v1060 = vmul.f32 %v1052, %v1026
    %v1061 = vmul.f32 %v1053, %v1028
    %v1062 = vadd.f32 %v1012, %v1054
    %v1063 = vadd.f32 %v1014, %v1055
    %v1064 = vadd.f32 %v1016, %v1056
    %v1065 = vadd.f32 %v1018, %v1057
    %v1066 = vadd.f32 %v1022, %v1058
    %v1067 = vadd.f32 %v1024, %v1059
    %v1068 = vadd.f32 %v1026, %v1060
    %v1069 = vadd.f32 %v1028, %v1061
    %v1070 = vmul.f32 %v1062, 0.7978846
    %v1071 = vmul.f32 %v1063, 0.7978846
    %v1072 = vmul.f32 %v1064, 0.7978846
    %v1073 = vmul.f32 %v1065, 0.7978846
    %v1074 = vmul.f32 %v1066, 0.7978846
    %v1075 = vmul.f32 %v1067, 0.7978846
    %v1076 = vmul.f32 %v1068, 0.7978846
    %v1077 = vmul.f32 %v1069, 0.7978846
    %v1078 = vtanh.pop %v1070
    %v1079 = vtanh.pop %v1071
    %v1080 = vtanh.pop %v1072
    %v1081 = vtanh.pop %v1073
    %v1082 = vtanh.pop %v1074
    %v1083 = vtanh.pop %v1075
    %v1084 = vtanh.pop %v1076
    %v1085 = vtanh.pop %v1077
    %v1086 = vadd.f32 %v1078, 1.0
    %v1087 = vadd.f32 %v1079, 1.0
    %v1088 = vadd.f32 %v1080, 1.0
    %v1089 = vadd.f32 %v1081, 1.0
    %v1090 = vadd.f32 %v1082, 1.0
    %v1091 = vadd.f32 %v1083, 1.0
    %v1092 = vadd.f32 %v1084, 1.0
    %v1093 = vadd.f32 %v1085, 1.0
    %v1094 = vmul.f32 %v1030, %v1086
    %v1095 = vmul.f32 %v1031, %v1087
    %v1096 = vmul.f32 %v1032, %v1088
    %v1097 = vmul.f32 %v1033, %v1089
    %v1098 = vmul.f32 %v1034, %v1090
    %v1099 = vmul.f32 %v1035, %v1091
    %v1100 = vmul.f32 %v1036, %v1092
    %v1101 = vmul.f32 %v1037, %v1093
    %v1102 = vpack.c.bf16 %v1096, %v1094
    %v1103 = vpack.c.bf16 %v1097, %v1095
    %v1104 = vpack.c.bf16 %v1100, %v1098
    %v1105 = vpack.c.bf16 %v1101, %v1099
    %v1106 = vld [vmem:[%s4] sm:$0xf]
    %v1107 = vld [vmem:[%s4 + $0x4] sm:$0xf]
    %v1108 = vld [vmem:[%s4 + $0x8] sm:$0xf]
    %v1109 = vld [vmem:[%s4 + $0xc] sm:$0xf]
    %v1110 = vld [vmem:[%s4 + $0x10] sm:$0xf]
    %v1111 = vld [vmem:[%s4 + $0x14] sm:$0xf]
    %v1112 = vld [vmem:[%s4 + $0x18] sm:$0xf]
    %v1113 = vld [vmem:[%s4 + $0x1c] sm:$0xf]
    %v1114 = vld [vmem:[%s4 + $0x20] sm:$0xf]
    %v1115 = vld [vmem:[%s4 + $0x24] sm:$0xf]
    %v1116 = vld [vmem:[%s4 + $0x28] sm:$0xf]
    %v1117 = vld [vmem:[%s4 + $0x2c] sm:$0xf]
    %v1118 = vld [vmem:[%s4 + $0x30] sm:$0xf]
    %v1119 = vld [vmem:[%s4 + $0x34] sm:$0xf]
    %v1120 = vld [vmem:[%s4 + $0x38] sm:$0xf]
    %v1121 = vld [vmem:[%s4 + $0x3c] sm:$0xf]
    %v1122 = vld [vmem:[%s4 + $0x40] sm:$0xf]
    %v1123 = vld [vmem:[%s4 + $0x44] sm:$0xf]
    %v1124 = vld [vmem:[%s4 + $0x48] sm:$0xf]
    %v1125 = vld [vmem:[%s4 + $0x4c] sm:$0xf]
    %v1126 = vld [vmem:[%s4 + $0x50] sm:$0xf]
    %v1127 = vld [vmem:[%s4 + $0x54] sm:$0xf]
    %v1128 = vld [vmem:[%s4 + $0x58] sm:$0xf]
    %v1129 = vld [vmem:[%s4 + $0x5c] sm:$0xf]
    %v1130 = vld [vmem:[%s4 + $0x60] sm:$0xf]
    %v1131 = vld [vmem:[%s4 + $0x64] sm:$0xf]
    %v1132 = vld [vmem:[%s4 + $0x68] sm:$0xf]
    %v1133 = vld [vmem:[%s4 + $0x6c] sm:$0xf]
    %v1134 = vld [vmem:[%s4 + $0x70] sm:$0xf]
    %v1135 = vld [vmem:[%s4 + $0x74] sm:$0xf]
    %v1136 = vld [vmem:[%s4 + $0x78] sm:$0xf]
    %v1137 = vld [vmem:[%s4 + $0x7c] sm:$0xf]
    %v1138 = vlaneseq
    %v1139 = vshrl.u32 %v1138, 7
    %v1140 = vsub.s32 0, %v1139
    %v1141 = vrot.slane %v75, %v1140
    %v1174 = vunpack.c.l.b16 %v1106
    %v1175 = vunpack.c.l.b16 %v1107
    %v1176 = vunpack.c.l.b16 %v1108
    %v1177 = vunpack.c.l.b16 %v1109
    %v1178 = vunpack.c.l.b16 %v1110
    %v1179 = vunpack.c.l.b16 %v1111
    %v1180 = vunpack.c.l.b16 %v1112
    %v1181 = vunpack.c.l.b16 %v1113
    %v1182 = vunpack.c.l.b16 %v1114
    %v1183 = vunpack.c.l.b16 %v1115
    %v1184 = vunpack.c.l.b16 %v1116
    %v1185 = vunpack.c.l.b16 %v1117
    %v1186 = vunpack.c.l.b16 %v1118
    %v1187 = vunpack.c.l.b16 %v1119
    %v1188 = vunpack.c.l.b16 %v1120
    %v1189 = vunpack.c.l.b16 %v1121
    %v1190 = vunpack.c.l.b16 %v1122
    %v1191 = vunpack.c.l.b16 %v1123
    %v1192 = vunpack.c.l.b16 %v1124
    %v1193 = vunpack.c.l.b16 %v1125
    %v1194 = vunpack.c.l.b16 %v1126
    %v1195 = vunpack.c.l.b16 %v1127
    %v1196 = vunpack.c.l.b16 %v1128
    %v1197 = vunpack.c.l.b16 %v1129
    %v1198 = vunpack.c.l.b16 %v1130
    %v1199 = vunpack.c.l.b16 %v1131
    %v1200 = vunpack.c.l.b16 %v1132
    %v1201 = vunpack.c.l.b16 %v1133
    %v1202 = vunpack.c.l.b16 %v1134
    %v1203 = vunpack.c.l.b16 %v1135
    %v1204 = vunpack.c.l.b16 %v1136
    %v1205 = vunpack.c.l.b16 %v1137
    %v1206 = vpack.c.b16 %v1175, %v1174
    %v1207 = vpack.c.b16 %v1177, %v1176
    %v1208 = vpack.c.b16 %v1179, %v1178
    %v1209 = vpack.c.b16 %v1181, %v1180
    %v1210 = vpack.c.b16 %v1183, %v1182
    %v1211 = vpack.c.b16 %v1185, %v1184
    %v1212 = vpack.c.b16 %v1187, %v1186
    %v1213 = vpack.c.b16 %v1189, %v1188
    %v1214 = vpack.c.b16 %v1191, %v1190
    %v1215 = vpack.c.b16 %v1193, %v1192
    %v1216 = vpack.c.b16 %v1195, %v1194
    %v1217 = vpack.c.b16 %v1197, %v1196
    %v1218 = vpack.c.b16 %v1199, %v1198
    %v1219 = vpack.c.b16 %v1201, %v1200
    %v1220 = vpack.c.b16 %v1203, %v1202
    %v1221 = vpack.c.b16 %v1205, %v1204
    %1238 = vmatprep.subr.bf16.mxu0 0
    %1239 = vmatpush1.bf16.msra.mxu0 %v1206
    %1240 = vmatprep.subr.bf16.mxu0 0
    %1241 = vmatpush1.bf16.msra.mxu0 %v1207
    %1242 = vmatprep.subr.bf16.mxu0 0
    %1243 = vmatpush1.bf16.msra.mxu0 %v1208
    %1244 = vmatprep.subr.bf16.mxu0 0
    %1245 = vmatpush1.bf16.msra.mxu0 %v1209
    %1246 = vmatprep.subr.bf16.mxu0 0
    %1247 = vmatpush1.bf16.msra.mxu0 %v1210
    %1248 = vmatprep.subr.bf16.mxu0 0
    %1249 = vmatpush1.bf16.msra.mxu0 %v1211
    %1250 = vmatprep.subr.bf16.mxu0 0
    %1251 = vmatpush1.bf16.msra.mxu0 %v1212
    %1252 = vmatprep.subr.bf16.mxu0 0
    %1253 = vmatpush1.bf16.msra.mxu0 %v1213
    %1254 = vmatprep.subr.bf16.mxu0 0
    %1255 = vmatpush1.bf16.msra.mxu0 %v1214
    %1256 = vmatprep.subr.bf16.mxu0 0
    %1257 = vmatpush1.bf16.msra.mxu0 %v1215
    %1258 = vmatprep.subr.bf16.mxu0 0
    %1259 = vmatpush1.bf16.msra.mxu0 %v1216
    %1260 = vmatprep.subr.bf16.mxu0 0
    %1261 = vmatpush1.bf16.msra.mxu0 %v1217
    %1262 = vmatprep.subr.bf16.mxu0 0
    %1263 = vmatpush1.bf16.msra.mxu0 %v1218
    %1264 = vmatprep.subr.bf16.mxu0 0
    %1265 = vmatpush1.bf16.msra.mxu0 %v1219
    %1266 = vmatprep.subr.bf16.mxu0 0
    %1267 = vmatpush1.bf16.msra.mxu0 %v1220
    %1268 = vmatprep.subr.bf16.mxu0 0
    %1269 = vmatpush1.bf16.msra.mxu0 %v1221
    %1270 = vmatprep.mubr.bf16.mxu0 %v1103
    %1271 = vmatmul.mubr.bf16.gmra.mrb[0].mxu0 %v1102
    %v1272 = vpop.f32.mrb[0].mxu0
    %v1273 = vadd.f32 %v1141, %v1272
    %v1274 = vpop.f32.mrb[0].mxu0
    %v1275 = vpop.f32.mrb[0].mxu0
    %v1276 = vadd.f32 %v1141, %v1275
    %v1277 = vpop.f32.mrb[0].mxu0
    %1278 = vmatprep.mubr.bf16.mxu0 %v1105
    %1279 = vmatmul.mubr.bf16.gmra.mrb[0].mxu0 %v1104
    %v1280 = vpop.f32.mrb[0].mxu0
    %v1281 = vadd.f32 %v1141, %v1280
    %v1282 = vpop.f32.mrb[0].mxu0
    %v1283 = vpop.f32.mrb[0].mxu0
    %v1284 = vadd.f32 %v1141, %v1283
    %v1285 = vpop.f32.mrb[0].mxu0
    %1286 = vdwg.mxu0
    %v1287 = vadd.f32 %v837, %v1273
    %v1288 = vadd.f32 %v838, %v1276
    %v1289 = vadd.f32 %v839, %v1281
    %v1290 = vadd.f32 %v840, %v1284
    %1291 = vst.msk [vmem:[#allocation2] sm:$0xff] %vm76, %v1287
    %1292 = vst.msk [vmem:[#allocation2 + $0x8] sm:$0xff] %vm76, %v1288
    %1293 = vst.msk [vmem:[#allocation2 + $0x10] sm:$0xff] %vm76, %v1289
    %1294 = vst.msk [vmem:[#allocation2 + $0x18] sm:$0xff] %vm76, %v1290
    // Predicated region
    $region38: #{transformer_block_forward.1} parent=1 // pred_check
      _
    $region39: #{transformer_block_forward.1} parent=1 // pred_check_branch
      %1296 = sbr.rel (0) target = $region41
    $region40: #{transformer_block_forward.1} parent=1 // pred_region
      %s1298 = ssub.s32 512, 512
      %1299 = vsyncadd [#allocation3], %s1298
      %s1300 = sshll.u32 [#allocation2], 4
      %s1301 = int_to_ptr.vmem [resolvable:$true] %s1300
      %1306 = dma.vmem_to_hbm [thread:$0]  %s1301, 512, %s9, [#allocation3], 128, 128, 8
    $region41: #{transformer_block_forward.1} parent=1 // pred_fallthru
      _
    // Predicated region
    $region42: #{transformer_block_forward.1} parent=1 // pred_check
      _
    $region43: #{transformer_block_forward.1} parent=1 // pred_check_branch
      %1308 = sbr.rel (0) target = $region45
    $region44: #{transformer_block_forward.1} parent=1 // pred_region
      %1309 = dma.done [#allocation3], 512
    $region45: #{transformer_block_forward.1} parent=1 // pred_fallthru
      _
    %1310 = vsyncpa [#allocation3], 1

</llo_original>
